<compile_context>
chip_gen: v5e
topology: v5e:2x2
jax: 0.10.0
libtpu: 0.0.40
codegen_flags: <defaults>
</compile_context>

<pallas_src>
import functools

import jax
import jax.numpy as jnp
from jax import lax
from jax.experimental import pallas as pl
from jax.experimental.pallas import tpu as pltpu

N_EMBEDS = 384    # n_embeds in the PyTorch module
HEAD_SIZE = 64    # one attention head
BLOCK_SIZE = 256  # size of the causal-mask buffer in the PyTorch module (T <= BLOCK_SIZE)


def head_kernel(x_ref, w_ref, o_ref, *, head_size):
    # x_ref: (B_blk, T, C) activation block.
    # w_ref: (C, 3*H) fused [Wq | Wk | Wv] weights (grid-invariant).
    # o_ref: (B_blk, T, H) output block.
    b_blk, t, c = x_ref.shape
    h = head_size
    compute_dtype = x_ref.dtype  # bf16 if the wrapper casted inputs, else f32

    # --- fused QKV projection: one big MXU dot over all rows in the block ---
    x2d = x_ref[...].reshape(b_blk * t, c)              # leading-dim merge (sublane reshape)
    qkv = jnp.dot(x2d, w_ref[...],
                  preferred_element_type=jnp.float32)   # (B_blk*T, 3H), f32 accum
    qkv = qkv.reshape(b_blk, t, 3 * h)

    q = qkv[:, :, :h]            # lane offset 0   (aligned)
    k = qkv[:, :, h:2 * h]       # lane offset 64
    v = qkv[:, :, 2 * h:]        # lane offset 128 (aligned)

    # PyTorch scales by C ** -0.5; apply it to q (T*H elems) instead of wei (T*T).
    q = (q * (c ** -0.5)).astype(compute_dtype)
    k = k.astype(compute_dtype)
    v = v.astype(compute_dtype)

    # Zero-pad the head dim of q/k to a full 128-lane vreg so the QK^T
    # contraction runs on lane-aligned operands (zeros add nothing to the dot).
    if h % 128 != 0:
        pad_w = 128 - (h % 128)
        zpad = jnp.zeros((b_blk, t, pad_w), dtype=compute_dtype)
        q = jnp.concatenate([q, zpad], axis=-1)
        k = jnp.concatenate([k, zpad], axis=-1)

    # q @ k^T without materializing a transpose: batched contraction on last dims.
    wei = jnp.einsum('bqd,bkd->bqk', q, k,
                     preferred_element_type=jnp.float32)       # (B_blk, T, T)

    # Causal (lower-triangular) mask; large finite negative instead of -inf.
    row = lax.broadcasted_iota(jnp.int32, (t, t), 0)
    col = lax.broadcasted_iota(jnp.int32, (t, t), 1)
    wei = jnp.where((row >= col)[None, :, :], wei, jnp.float32(-1e30))

    # Exact softmax in f32 (exact divide -- approx reciprocal broke 1e-4 parity).
    wei = wei - jnp.max(wei, axis=-1, keepdims=True)
    p = jnp.exp(wei)
    p = p / jnp.sum(p, axis=-1, keepdims=True)

    out = jnp.einsum('bqk,bkd->bqd', p.astype(compute_dtype), v,
                     preferred_element_type=jnp.float32)       # (B_blk, T, H)
    o_ref[...] = out.astype(o_ref.dtype)


def fuse_qkv_weights(wq, wk, wv):
    """Fuse the three (C, H) projection weights ONCE at init time -> (C, 3H)."""
    return jnp.concatenate([wq, wk, wv], axis=1)


def _pick_b_blk(B, T):
    """Batch elements per grid step.

    Amortizes the ~0.35us per-grid-step overhead (~1024 projection rows per
    step) while preferring an even grid length so the 'parallel' axis splits
    across both v7x TensorCores.
    """
    target_rows = 1024
    want = max(1, min(B, target_rows // max(T, 1)))
    candidates = [d for d in range(1, B + 1) if B % d == 0 and d <= want] or [1]
    b_blk = max(candidates)
    even = [d for d in candidates if (B // d) % 2 == 0]
    if even and (B // b_blk) % 2 != 0:
        b_blk = max(even)
    return b_blk


def head_forward(x, w_qkv, *, b_blk=None, use_bf16=False):
    """x: (B, T, C); w_qkv: (C, 3H) pre-fused [Wq|Wk|Wv] -> (B, T, H) float32."""
    B, T, C = x.shape
    H3 = w_qkv.shape[1]
    H = H3 // 3

    if b_blk is None:
        b_blk = _pick_b_blk(B, T)
    assert B % b_blk == 0, "b_blk must divide B"
    grid_b = B // b_blk

    if use_bf16:
        # bf16 MXU inputs (native MXU rate); gated off by default to keep
        # bit-level parity with the f32 reference.  Softmax math stays f32.
        x = x.astype(jnp.bfloat16)
        w_qkv = w_qkv.astype(jnp.bfloat16)

    kernel = functools.partial(head_kernel, head_size=H)

    return pl.pallas_call(
        kernel,
        out_shape=jax.ShapeDtypeStruct((B, T, H), jnp.float32),
        grid_spec=pltpu.PrefetchScalarGridSpec(
            num_scalar_prefetch=0,
            grid=(grid_b,),
            in_specs=[
                # B_blk batch elements per step.
                pl.BlockSpec((b_blk, T, C), lambda b: (b, 0, 0)),
                # Grid-invariant fused weights: DMA'd once per call.
                pl.BlockSpec((C, H3), lambda b: (0, 0)),
            ],
            out_specs=pl.BlockSpec((b_blk, T, H), lambda b: (b, 0, 0)),
        ),
        compiler_params=pltpu.CompilerParams(
            # Independent batch-block axis -> megacore sharding on v7x.
            dimension_semantics=("parallel",),
        ),
    )(x, w_qkv)


def head_reference(x, wk, wq, wv):
    """Pure-JAX reference matching the PyTorch forward."""
    B, T, C = x.shape
    k = x @ wk
    q = x @ wq
    v = x @ wv
    wei = jnp.einsum("btd,bsd->bts", q, k) * (C ** -0.5)
    mask = jnp.tril(jnp.ones((T, T), dtype=bool))
    wei = jnp.where(mask, wei, -jnp.inf)
    wei = jax.nn.softmax(wei, axis=-1)
    return wei @ v


if __name__ == "__main__":
    key = jax.random.PRNGKey(0)
    kx, kk, kq, kv = jax.random.split(key, 4)

    B, T, C, H = 2, 8, N_EMBEDS, HEAD_SIZE
    x = jax.random.normal(kx, (B, T, C), dtype=jnp.float32)

    # Deterministic "nn.Linear(bias=False)"-style weights stored as (C, H)
    # (already transposed relative to PyTorch's (H, C) weight).
    bound = 1.0 / (C ** 0.5)
    wk = jax.random.uniform(kk, (C, H), jnp.float32, -bound, bound)
    wq = jax.random.uniform(kq, (C, H), jnp.float32, -bound, bound)
    wv = jax.random.uniform(kv, (C, H), jnp.float32, -bound, bound)

    # Fuse the projection weights ONCE (init-time), not inside the forward.
    w_qkv = fuse_qkv_weights(wq, wk, wv)

    out = head_forward(x, w_qkv)
    out = jax.block_until_ready(out)

    ref = head_reference(x, wk, wq, wv)
    assert out.shape == (B, T, H)
    assert jnp.allclose(out, ref, atol=1e-4, rtol=1e-4)

    print("KERNEL_OK")
</pallas_src>

<mosaic_0001>
module attributes {stable_mosaic.version = 11 : i64} {
  func.func @head_kernel(%arg0: i32, %arg1: memref<1x8x384xf32, #tpu.memory_space<vmem>>, %arg2: memref<384x192xf32, #tpu.memory_space<vmem>>, %arg3: memref<1x8x64xf32, #tpu.memory_space<vmem>>) attributes {dimension_semantics = [#tpu.dimension_semantics<parallel>], iteration_bounds = array<i64: 2>, scalar_prefetch = 0 : i64, scratch_operands = 0 : i64, tpu.core_type = #tpu.core_type<tc>, window_params = [{transform_indices = @transform_0, window_bounds = array<i64: 1, 8, 384>}, {pipeline_mode = #tpu.pipeline_mode<synchronous>, transform_indices = @transform_1, window_bounds = array<i64: 384, 192>}, {transform_indices = @transform_2, window_bounds = array<i64: 1, 8, 64>}]} {
    %c0 = arith.constant 0 : index
    %c0_0 = arith.constant 0 : index
    %c0_1 = arith.constant 0 : index
    %0 = vector.load %arg1[%c0, %c0_0, %c0_1] : memref<1x8x384xf32, #tpu.memory_space<vmem>>, vector<1x8x384xf32>
    %1 = vector.shape_cast %0 : vector<1x8x384xf32> to vector<8x384xf32>
    %c0_2 = arith.constant 0 : index
    %c0_3 = arith.constant 0 : index
    %2 = vector.load %arg2[%c0_2, %c0_3] : memref<384x192xf32, #tpu.memory_space<vmem>>, vector<384x192xf32>
    %cst = arith.constant dense<0.000000e+00> : vector<8x192xf32>
    %3 = tpu.matmul %1, %2, %cst {dimension_numbers = #tpu.dot_dimension_numbers<[1], [0], [0], [1], [0, 0, 1, 1], [], []>} : vector<8x384xf32>, vector<384x192xf32>, vector<8x192xf32> -> vector<8x192xf32>
    %4 = vector.shape_cast %3 : vector<8x192xf32> to vector<1x8x192xf32>
    %5 = vector.extract_strided_slice %4 {offsets = [0, 0, 0], sizes = [1, 8, 64], strides = [1, 1, 1]} : vector<1x8x192xf32> to vector<1x8x64xf32>
    %6 = vector.extract_strided_slice %4 {offsets = [0, 0, 64], sizes = [1, 8, 64], strides = [1, 1, 1]} : vector<1x8x192xf32> to vector<1x8x64xf32>
    %7 = vector.extract_strided_slice %4 {offsets = [0, 0, 128], sizes = [1, 8, 64], strides = [1, 1, 1]} : vector<1x8x192xf32> to vector<1x8x64xf32>
    %cst_4 = arith.constant 0.0510310382 : f32
    %8 = vector.broadcast %cst_4 : f32 to vector<1x8x64xf32>
    %9 = arith.mulf %5, %8 : vector<1x8x64xf32>
    %cst_5 = arith.constant 0.000000e+00 : f32
    %10 = vector.broadcast %cst_5 : f32 to vector<1x8x64xf32>
    %11 = tpu.concatenate %9, %10 in 2 : vector<1x8x64xf32>, vector<1x8x64xf32> -> vector<1x8x128xf32>
    %12 = tpu.concatenate %6, %10 in 2 : vector<1x8x64xf32>, vector<1x8x64xf32> -> vector<1x8x128xf32>
    "tpu.trace_start"() <{level = 10 : i32, message = "bqd,bkd->bqk"}> : () -> ()
    %cst_6 = arith.constant dense<0.000000e+00> : vector<1x8x8xf32>
    %13 = tpu.matmul %11, %12, %cst_6 {dimension_numbers = #tpu.dot_dimension_numbers<[2], [2], [1], [1], [0, 0, 0, 1, 1, 1], [0], [0]>} : vector<1x8x128xf32>, vector<1x8x128xf32>, vector<1x8x8xf32> -> vector<1x8x8xf32>
    "tpu.trace_stop"() : () -> ()
    %14 = tpu.iota {dimensions = array<i32: 0>} : vector<8x8xi32>
    %15 = tpu.iota {dimensions = array<i32: 1>} : vector<8x8xi32>
    %16 = arith.cmpi sge, %14, %15 : vector<8x8xi32>
    %17 = vector.shape_cast %16 : vector<8x8xi1> to vector<1x8x8xi1>
    %cst_7 = arith.constant -1.000000e+30 : f32
    %18 = vector.broadcast %cst_7 : f32 to vector<1x8x8xf32>
    %19 = arith.select %17, %13, %18 : vector<1x8x8xi1>, vector<1x8x8xf32>
    %cst_8 = arith.constant dense<0xFF800000> : vector<1x8xf32>
    %20 = vector.multi_reduction <maximumf>, %19, %cst_8 [2] : vector<1x8x8xf32> to vector<1x8xf32>
    %21 = vector.shape_cast %20 : vector<1x8xf32> to vector<1x8x1xf32>
    %22 = vector.broadcast %21 : vector<1x8x1xf32> to vector<1x8x8xf32>
    %23 = arith.subf %19, %22 : vector<1x8x8xf32>
    %24 = math.exp %23 : vector<1x8x8xf32>
    %cst_9 = arith.constant dense<0.000000e+00> : vector<1x8xf32>
    %25 = vector.multi_reduction <add>, %24, %cst_9 [2] : vector<1x8x8xf32> to vector<1x8xf32>
    %26 = vector.shape_cast %25 : vector<1x8xf32> to vector<1x8x1xf32>
    %27 = vector.broadcast %26 : vector<1x8x1xf32> to vector<1x8x8xf32>
    %28 = arith.divf %24, %27 : vector<1x8x8xf32>
    "tpu.trace_start"() <{level = 10 : i32, message = "bqk,bkd->bqd"}> : () -> ()
    %cst_10 = arith.constant dense<0.000000e+00> : vector<1x8x64xf32>
    %29 = tpu.matmul %28, %7, %cst_10 {dimension_numbers = #tpu.dot_dimension_numbers<[2], [1], [1], [2], [0, 0, 0, 1, 1, 2], [0], [0]>} : vector<1x8x8xf32>, vector<1x8x64xf32>, vector<1x8x64xf32> -> vector<1x8x64xf32>
    "tpu.trace_stop"() : () -> ()
    %c0_11 = arith.constant 0 : index
    %c0_12 = arith.constant 0 : index
    %c0_13 = arith.constant 0 : index
    %30 = vector.load %arg3[%c0_11, %c0_12, %c0_13] : memref<1x8x64xf32, #tpu.memory_space<vmem>>, vector<1x8x64xf32>
    tpu.vector_store %arg3[%c0_11, %c0_12, %c0_13], %29 {strides = array<i32>} : memref<1x8x64xf32, #tpu.memory_space<vmem>>, vector<1x8x64xf32>,
    return
  }
  func.func @transform_0(%arg0: i32) -> (i32, i32, i32) {
    %c0_i32 = arith.constant 0 : i32
    %c0_i32_0 = arith.constant 0 : i32
    %c0_i32_1 = arith.constant 0 : i32
    return %arg0, %c0_i32, %c0_i32_0 : i32, i32, i32
  }
  func.func @transform_1(%arg0: i32) -> (i32, i32) {
    %c0_i32 = arith.constant 0 : i32
    %c0_i32_0 = arith.constant 0 : i32
    %c0_i32_1 = arith.constant 0 : i32
    return %c0_i32, %c0_i32_0 : i32, i32
  }
  func.func @transform_2(%arg0: i32) -> (i32, i32, i32) {
    %c0_i32 = arith.constant 0 : i32
    %c0_i32_0 = arith.constant 0 : i32
    %c0_i32_1 = arith.constant 0 : i32
    return %arg0, %c0_i32, %c0_i32_0 : i32, i32, i32
  }
}

</mosaic_0001>

<llo_original>
// kernel: tpu_custom_call.1
$region0: #{tpu_custom_call.1}
  #allocation0 [shape = 'u32[]', space=smem, size = 0x4, offset = 0x4, fixed_abs, tag = 'smem constant byte address 0x4 - core index']
  #allocation1 [shape = 'u32[72,128]{1,0:T(1,128)}', space=vmem, size = 0x9000, scoped, tag = 'internal scratch']
  %s0 = inlined_call_operand.vmem [shape: f32[2,8,384], index: 0, kind: input, shape index: {}]
  %s1 = inlined_call_operand.vmem [shape: f32[384,192], index: 1, kind: input, shape index: {}]
  %s2 = inlined_call_operand.hbm [shape: f32[2,8,64], index: 2, kind: output, shape index: {}]
  %s3 = sld [smem:[#allocation0]]
  $region41: #{tpu_custom_call.1} parent=0
    _
  %s5 = ssub.s32 1, %s3
  %s6 = scalar_select 0, %s5, %s3
  $region1: #{tpu_custom_call.1} parent=0
    #allocation2 [shape = 'u8[8192]{0}', space=vmem, size = 0x2000, scoped, tag = 'output window, operand 0']
    #allocation3 [shape = 's32[2]{0}', space=sflag, size = 0x8, scoped, tag = 'scoped memory for tpu_custom_call.1']
    %7 = vsyncpa [#allocation3], 0
    %s8 = scalar_lea.sflag [#allocation3], 1
    %9 = vsyncpa %s8, 0
    loop: start=0, step=1, limit=4
    $region2: #{tpu_custom_call.1} parent=1 // loop_pre_header
      _
    $region3: #{tpu_custom_call.1} parent=1 // loop_header
      %s11 = sphi 0, %s15
      %p12 = scmp.ge.s32.totalorder %s11, 4
      %s21 = sphi 0, %s23
      %s24 = sphi 0, %s21
      %s25 = sphi 0, %s24
      %s41 = sphi 0, %s25
      %s45 = sphi 0, %s45
      %s47 = sphi 0, %s45
      %s48 = sphi 0, %s47
      %s62 = sphi 0, %s48
      %s68 = sphi 0, %s70
      %s71 = sphi 0, %s68
      %s72 = sphi 0, %s71
      %s88 = sphi 0, %s72
    $region4: #{tpu_custom_call.1} parent=1 // loop_header_branch
      %14 = sbr.rel (%p12) target = $region8
    $region5: #{tpu_custom_call.1} parent=1 // loop_body
      %s16 = ssub.s32 %s11, 1
      %s17 = ssub.s32 %s11, 2
      %s18 = sadd.s32 %s11, 1
      %s19 = ssub.s32 %s11, %s18
      %p20 = scmp.eq.s32.totalorder %s19, 0
      %s22 = sadd.s32 %s21, 1
      %s23 = scalar_select %p20, %s21, %s22
      %p26 = pneg %p20
      %p27 = scmp.eq.s32.totalorder %s11, 1
      %p28 = por %p26, %p27
      %p29 = scmp.ne.s32.totalorder %s21, %s24
      %p30 = scmp.eq.s32.totalorder %s11, 0
      %p31 = por %p29, %p30
      %p32 = scmp.ne.s32.totalorder %s21, %s24
      %p33 = scmp.eq.s32.totalorder %s16, 1
      %p34 = por %p32, %p33
      %p35 = scmp.ne.s32.totalorder %s24, %s25
      %p36 = scmp.eq.s32.totalorder %s16, 0
      %p37 = por %p35, %p36
      %p38 = scmp.ne.s32.totalorder %s24, %s25
      %p39 = scmp.eq.s32.totalorder %s17, 1
      %p40 = por %p38, %p39
      %p42 = scmp.ne.s32.totalorder %s25, %s41
      %p43 = scmp.eq.s32.totalorder %s17, 0
      %p44 = por %p42, %p43
      %s46 = sadd.s32 %s45, 1
      %p49 = scmp.eq.s32.totalorder %s11, 1
      %p50 = scmp.ne.s32.totalorder %s45, %s47
      %p51 = scmp.eq.s32.totalorder %s11, 0
      %p52 = por %p50, %p51
      %p53 = scmp.ne.s32.totalorder %s45, %s47
      %p54 = scmp.eq.s32.totalorder %s16, 1
      %p55 = por %p53, %p54
      %p56 = scmp.ne.s32.totalorder %s47, %s48
      %p57 = scmp.eq.s32.totalorder %s16, 0
      %p58 = por %p56, %p57
      %p59 = scmp.ne.s32.totalorder %s47, %s48
      %p60 = scmp.eq.s32.totalorder %s17, 1
      %p61 = por %p59, %p60
      %p63 = scmp.ne.s32.totalorder %s48, %s62
      %p64 = scmp.eq.s32.totalorder %s17, 0
      %p65 = por %p63, %p64
      %s66 = ssub.s32 %s11, %s18
      %p67 = scmp.eq.s32.totalorder %s66, 0
      %s69 = sadd.s32 %s68, 1
      %s70 = scalar_select %p67, %s68, %s69
      %p73 = pneg %p67
      %p74 = scmp.eq.s32.totalorder %s11, 1
      %p75 = por %p73, %p74
      %p76 = scmp.ne.s32.totalorder %s68, %s71
      %p77 = scmp.eq.s32.totalorder %s11, 0
      %p78 = por %p76, %p77
      %p79 = scmp.ne.s32.totalorder %s68, %s71
      %p80 = scmp.eq.s32.totalorder %s16, 1
      %p81 = por %p79, %p80
      %p82 = scmp.ne.s32.totalorder %s71, %s72
      %p83 = scmp.eq.s32.totalorder %s16, 0
      %p84 = por %p82, %p83
      %p85 = scmp.ne.s32.totalorder %s71, %s72
      %p86 = scmp.eq.s32.totalorder %s17, 1
      %p87 = por %p85, %p86
      %p89 = scmp.ne.s32.totalorder %s72, %s88
      %p90 = scmp.eq.s32.totalorder %s17, 0
      %p91 = por %p89, %p90
      %p92 = scmp.le.s32.totalorder 1, %s11
      %p93 = scmp.lt.s32.totalorder %s11, 3
      %p94 = pnand %p92, %p93
      %p95 = pneg %p94
      // Predicated region
      $region9: #{tpu_custom_call.1} parent=5 // pred_check
        _
      $region10: #{tpu_custom_call.1} parent=5 // pred_check_branch
        %97 = sbr.rel (%p94) target = $region12
      $region11: #{tpu_custom_call.1} parent=5 // pred_region
        %s98 = ssub.s32 %s11, 1
        // Predicated region
        $region13: #{tpu_custom_call.1} parent=11 // pred_check
          %p99 = pneg %p58
        $region14: #{tpu_custom_call.1} parent=11 // pred_check_branch
          %101 = sbr.rel (%p99) target = $region16
        $region15: #{tpu_custom_call.1} parent=11 // pred_region
          _
        $region16: #{tpu_custom_call.1} parent=11 // pred_fallthru
          _
      $region12: #{tpu_custom_call.1} parent=5 // pred_fallthru
        _
      %p102 = scmp.lt.s32.totalorder %s11, 2
      // Predicated region
      $region17: #{tpu_custom_call.1} parent=5 // pred_check
        %p103 = pneg %p102
      $region18: #{tpu_custom_call.1} parent=5 // pred_check_branch
        %105 = sbr.rel (%p103) target = $region20
      $region19: #{tpu_custom_call.1} parent=5 // pred_region
        // Predicated region
        $region21: #{tpu_custom_call.1} parent=19 // pred_check
          %p106 = pneg %p31
        $region22: #{tpu_custom_call.1} parent=19 // pred_check_branch
          %108 = sbr.rel (%p106) target = $region24
        $region23: #{tpu_custom_call.1} parent=19 // pred_region
          %p109 = scmp.lt.s32.totalorder %s11, 1
          %s110 = scalar_select %p109, %s11, 1
          %s111 = smul.addr %s110, 3
          %s112 = smul.addr %s111, 8
          %s113 = scalar_lea.vmem %s0, %s112
        $region24: #{tpu_custom_call.1} parent=19 // pred_fallthru
          _
      $region20: #{tpu_custom_call.1} parent=5 // pred_fallthru
        _
      %p114 = scmp.le.s32.totalorder 1, %s11
      %p115 = scmp.lt.s32.totalorder %s11, 3
      %p116 = pnand %p114, %p115
      %p117 = pneg %p116
      // Predicated region
      $region25: #{tpu_custom_call.1} parent=5 // pred_check
        _
      $region26: #{tpu_custom_call.1} parent=5 // pred_check_branch
        %119 = sbr.rel (%p116) target = $region28
      $region27: #{tpu_custom_call.1} parent=5 // pred_region
        %s120 = ssub.s32 %s11, 1
        %p121 = scmp.lt.s32.totalorder %s16, 1
        %s122 = scalar_select %p121, %s16, 1
        %s123 = smul.addr %s122, 3
        %s124 = smul.addr %s123, 8
        %s125 = scalar_lea.vmem %s0, %s124
        %p126 = pneg %p37
        %p127 = pneg %p34
        %p128 = pneg %p58
        %p129 = pneg %p55
        %p130 = pneg %p84
        %p131 = pneg %p81
        %s132 = sand.u32 %s71, 1
        %s133 = scalar_lea.sflag [#allocation3], %s132
        %s134 = sand.u32 %s71, 1
        %s135 = smul.addr %s134, 8
        %s136 = scalar_lea.vmem [#allocation2], %s135
        %p137 = scmp.lt.s32.totalorder %s16, 1
        %s138 = scalar_select %p137, %s16, 1
        %s139 = smul.addr %s138, 3
        %s140 = smul.addr %s139, 8
        %s141 = scalar_lea.vmem %s0, %s140
        %v142 = vld [vmem:[%s141] sm:$0xff]
        %v143 = vld [vmem:[%s141 + $0x8] sm:$0xff]
        %v144 = vld [vmem:[%s141 + $0x10] sm:$0xff]
        %v145 = vld [vmem:[%s1] sm:$0xff]
        %v146 = vld [vmem:[%s1 + $0x8] sm:$0xff]
        %v147 = vld [vmem:[%s1 + $0x10] sm:$0xff]
        %v148 = vld [vmem:[%s1 + $0x18] sm:$0xff]
        %v149 = vld [vmem:[%s1 + $0x20] sm:$0xff]
        %v150 = vld [vmem:[%s1 + $0x28] sm:$0xff]
        %v151 = vld [vmem:[%s1 + $0x30] sm:$0xff]
        %v152 = vld [vmem:[%s1 + $0x38] sm:$0xff]
        %v153 = vld [vmem:[%s1 + $0x40] sm:$0xff]
        %v154 = vld [vmem:[%s1 + $0x48] sm:$0xff]
        %v155 = vld [vmem:[%s1 + $0x50] sm:$0xff]
        %v156 = vld [vmem:[%s1 + $0x58] sm:$0xff]
        %v157 = vld [vmem:[%s1 + $0x60] sm:$0xff]
        %v158 = vld [vmem:[%s1 + $0x68] sm:$0xff]
        %v159 = vld [vmem:[%s1 + $0x70] sm:$0xff]
        %v160 = vld [vmem:[%s1 + $0x78] sm:$0xff]
        %v161 = vld [vmem:[%s1 + $0x80] sm:$0xff]
        %v162 = vld [vmem:[%s1 + $0x88] sm:$0xff]
        %v163 = vld [vmem:[%s1 + $0x90] sm:$0xff]
        %v164 = vld [vmem:[%s1 + $0x98] sm:$0xff]
        %v165 = vld [vmem:[%s1 + $0xa0] sm:$0xff]
        %v166 = vld [vmem:[%s1 + $0xa8] sm:$0xff]
        %v167 = vld [vmem:[%s1 + $0xb0] sm:$0xff]
        %v168 = vld [vmem:[%s1 + $0xb8] sm:$0xff]
        %v169 = vld [vmem:[%s1 + $0xc0] sm:$0xff]
        %v170 = vld [vmem:[%s1 + $0xc8] sm:$0xff]
        %v171 = vld [vmem:[%s1 + $0xd0] sm:$0xff]
        %v172 = vld [vmem:[%s1 + $0xd8] sm:$0xff]
        %v173 = vld [vmem:[%s1 + $0xe0] sm:$0xff]
        %v174 = vld [vmem:[%s1 + $0xe8] sm:$0xff]
        %v175 = vld [vmem:[%s1 + $0xf0] sm:$0xff]
        %v176 = vld [vmem:[%s1 + $0xf8] sm:$0xff]
        %v177 = vld [vmem:[%s1 + $0x100] sm:$0xff]
        %v178 = vld [vmem:[%s1 + $0x108] sm:$0xff]
        %v179 = vld [vmem:[%s1 + $0x110] sm:$0xff]
        %v180 = vld [vmem:[%s1 + $0x118] sm:$0xff]
        %v181 = vld [vmem:[%s1 + $0x120] sm:$0xff]
        %v182 = vld [vmem:[%s1 + $0x128] sm:$0xff]
        %v183 = vld [vmem:[%s1 + $0x130] sm:$0xff]
        %v184 = vld [vmem:[%s1 + $0x138] sm:$0xff]
        %v185 = vld [vmem:[%s1 + $0x140] sm:$0xff]
        %v186 = vld [vmem:[%s1 + $0x148] sm:$0xff]
        %v187 = vld [vmem:[%s1 + $0x150] sm:$0xff]
        %v188 = vld [vmem:[%s1 + $0x158] sm:$0xff]
        %v189 = vld [vmem:[%s1 + $0x160] sm:$0xff]
        %v190 = vld [vmem:[%s1 + $0x168] sm:$0xff]
        %v191 = vld [vmem:[%s1 + $0x170] sm:$0xff]
        %v192 = vld [vmem:[%s1 + $0x178] sm:$0xff]
        %v193 = vld [vmem:[%s1 + $0x180] sm:$0xff]
        %v194 = vld [vmem:[%s1 + $0x188] sm:$0xff]
        %v195 = vld [vmem:[%s1 + $0x190] sm:$0xff]
        %v196 = vld [vmem:[%s1 + $0x198] sm:$0xff]
        %v197 = vld [vmem:[%s1 + $0x1a0] sm:$0xff]
        %v198 = vld [vmem:[%s1 + $0x1a8] sm:$0xff]
        %v199 = vld [vmem:[%s1 + $0x1b0] sm:$0xff]
        %v200 = vld [vmem:[%s1 + $0x1b8] sm:$0xff]
        %v201 = vld [vmem:[%s1 + $0x1c0] sm:$0xff]
        %v202 = vld [vmem:[%s1 + $0x1c8] sm:$0xff]
        %v203 = vld [vmem:[%s1 + $0x1d0] sm:$0xff]
        %v204 = vld [vmem:[%s1 + $0x1d8] sm:$0xff]
        %v205 = vld [vmem:[%s1 + $0x1e0] sm:$0xff]
        %v206 = vld [vmem:[%s1 + $0x1e8] sm:$0xff]
        %v207 = vld [vmem:[%s1 + $0x1f0] sm:$0xff]
        %v208 = vld [vmem:[%s1 + $0x1f8] sm:$0xff]
        %v209 = vld [vmem:[%s1 + $0x200] sm:$0xff]
        %v210 = vld [vmem:[%s1 + $0x208] sm:$0xff]
        %v211 = vld [vmem:[%s1 + $0x210] sm:$0xff]
        %v212 = vld [vmem:[%s1 + $0x218] sm:$0xff]
        %v213 = vld [vmem:[%s1 + $0x220] sm:$0xff]
        %v214 = vld [vmem:[%s1 + $0x228] sm:$0xff]
        %v215 = vld [vmem:[%s1 + $0x230] sm:$0xff]
        %v216 = vld [vmem:[%s1 + $0x238] sm:$0xff]
        %v217 = vld [vmem:[%s1 + $0x240] sm:$0xff]
        %v218 = vld [vmem:[%s1 + $0x248] sm:$0xff]
        %v219 = vld [vmem:[%s1 + $0x250] sm:$0xff]
        %v220 = vld [vmem:[%s1 + $0x258] sm:$0xff]
        %v221 = vld [vmem:[%s1 + $0x260] sm:$0xff]
        %v222 = vld [vmem:[%s1 + $0x268] sm:$0xff]
        %v223 = vld [vmem:[%s1 + $0x270] sm:$0xff]
        %v224 = vld [vmem:[%s1 + $0x278] sm:$0xff]
        %v225 = vld [vmem:[%s1 + $0x280] sm:$0xff]
        %v226 = vld [vmem:[%s1 + $0x288] sm:$0xff]
        %v227 = vld [vmem:[%s1 + $0x290] sm:$0xff]
        %v228 = vld [vmem:[%s1 + $0x298] sm:$0xff]
        %v229 = vld [vmem:[%s1 + $0x2a0] sm:$0xff]
        %v230 = vld [vmem:[%s1 + $0x2a8] sm:$0xff]
        %v231 = vld [vmem:[%s1 + $0x2b0] sm:$0xff]
        %v232 = vld [vmem:[%s1 + $0x2b8] sm:$0xff]
        %v233 = vld [vmem:[%s1 + $0x2c0] sm:$0xff]
        %v234 = vld [vmem:[%s1 + $0x2c8] sm:$0xff]
        %v235 = vld [vmem:[%s1 + $0x2d0] sm:$0xff]
        %v236 = vld [vmem:[%s1 + $0x2d8] sm:$0xff]
        %v237 = vld [vmem:[%s1 + $0x2e0] sm:$0xff]
        %v238 = vld [vmem:[%s1 + $0x2e8] sm:$0xff]
        %v239 = vld [vmem:[%s1 + $0x2f0] sm:$0xff]
        %v240 = vld [vmem:[%s1 + $0x2f8] sm:$0xff]
        %241 = vmatpush.msra.mxu0 %v175
        %242 = vmatpush.msra.mxu0 %v173
        %243 = vmatpush.msra.mxu0 %v171
        %244 = vmatpush.msra.mxu0 %v169
        %245 = vmatpush.msra.mxu0 %v167
        %246 = vmatpush.msra.mxu0 %v165
        %247 = vmatpush.msra.mxu0 %v163
        %248 = vmatpush.msra.mxu0 %v161
        %249 = vmatpush.msra.mxu0 %v159
        %250 = vmatpush.msra.mxu0 %v157
        %251 = vmatpush.msra.mxu0 %v155
        %252 = vmatpush.msra.mxu0 %v153
        %253 = vmatpush.msra.mxu0 %v151
        %254 = vmatpush.msra.mxu0 %v149
        %255 = vmatpush.msra.mxu0 %v147
        %256 = vmatpush.msra.mxu0 %v145
        %257 = vmatmul.f32.gmra.mxu0 %v142
        %v258 = vpop.f32.mrf.mxu0
        %v259 = vadd.f32 0.0, %v258
        %260 = vdwg.mxu0
        %261 = vmatpush.msra.mxu0 %v207
        %262 = vmatpush.msra.mxu0 %v205
        %263 = vmatpush.msra.mxu0 %v203
        %264 = vmatpush.msra.mxu0 %v201
        %265 = vmatpush.msra.mxu0 %v199
        %266 = vmatpush.msra.mxu0 %v197
        %267 = vmatpush.msra.mxu0 %v195
        %268 = vmatpush.msra.mxu0 %v193
        %269 = vmatpush.msra.mxu0 %v191
        %270 = vmatpush.msra.mxu0 %v189
        %271 = vmatpush.msra.mxu0 %v187
        %272 = vmatpush.msra.mxu0 %v185
        %273 = vmatpush.msra.mxu0 %v183
        %274 = vmatpush.msra.mxu0 %v181
        %275 = vmatpush.msra.mxu0 %v179
        %276 = vmatpush.msra.mxu0 %v177
        %277 = vmatmul.f32.gmra.mxu0 %v143
        %v278 = vpop.f32.mrf.mxu0
        %v279 = vadd.f32 %v259, %v278
        %280 = vdwg.mxu0
        %281 = vmatpush.msra.mxu0 %v239
        %282 = vmatpush.msra.mxu0 %v237
        %283 = vmatpush.msra.mxu0 %v235
        %284 = vmatpush.msra.mxu0 %v233
        %285 = vmatpush.msra.mxu0 %v231
        %286 = vmatpush.msra.mxu0 %v229
        %287 = vmatpush.msra.mxu0 %v227
        %288 = vmatpush.msra.mxu0 %v225
        %289 = vmatpush.msra.mxu0 %v223
        %290 = vmatpush.msra.mxu0 %v221
        %291 = vmatpush.msra.mxu0 %v219
        %292 = vmatpush.msra.mxu0 %v217
        %293 = vmatpush.msra.mxu0 %v215
        %294 = vmatpush.msra.mxu0 %v213
        %295 = vmatpush.msra.mxu0 %v211
        %296 = vmatpush.msra.mxu0 %v209
        %297 = vmatmul.f32.gmra.mxu0 %v144
        %v298 = vpop.f32.mrf.mxu0
        %v299 = vadd.f32 %v279, %v298
        %300 = vdwg.mxu0
        %301 = vmatpush.msra.mxu0 %v176
        %302 = vmatpush.msra.mxu0 %v174
        %303 = vmatpush.msra.mxu0 %v172
        %304 = vmatpush.msra.mxu0 %v170
        %305 = vmatpush.msra.mxu0 %v168
        %306 = vmatpush.msra.mxu0 %v166
        %307 = vmatpush.msra.mxu0 %v164
        %308 = vmatpush.msra.mxu0 %v162
        %309 = vmatpush.msra.mxu0 %v160
        %310 = vmatpush.msra.mxu0 %v158
        %311 = vmatpush.msra.mxu0 %v156
        %312 = vmatpush.msra.mxu0 %v154
        %313 = vmatpush.msra.mxu0 %v152
        %314 = vmatpush.msra.mxu0 %v150
        %315 = vmatpush.msra.mxu0 %v148
        %316 = vmatpush.msra.mxu0 %v146
        %317 = vmatmul.f32.gmra.mxu0 %v142
        %v318 = vpop.f32.mrf.mxu0
        %v319 = vadd.f32 0.0, %v318
        %320 = vdwg.mxu0
        %321 = vmatpush.msra.mxu0 %v208
        %322 = vmatpush.msra.mxu0 %v206
        %323 = vmatpush.msra.mxu0 %v204
        %324 = vmatpush.msra.mxu0 %v202
        %325 = vmatpush.msra.mxu0 %v200
        %326 = vmatpush.msra.mxu0 %v198
        %327 = vmatpush.msra.mxu0 %v196
        %328 = vmatpush.msra.mxu0 %v194
        %329 = vmatpush.msra.mxu0 %v192
        %330 = vmatpush.msra.mxu0 %v190
        %331 = vmatpush.msra.mxu0 %v188
        %332 = vmatpush.msra.mxu0 %v186
        %333 = vmatpush.msra.mxu0 %v184
        %334 = vmatpush.msra.mxu0 %v182
        %335 = vmatpush.msra.mxu0 %v180
        %336 = vmatpush.msra.mxu0 %v178
        %337 = vmatmul.f32.gmra.mxu0 %v143
        %v338 = vpop.f32.mrf.mxu0
        %v339 = vadd.f32 %v319, %v338
        %340 = vdwg.mxu0
        %341 = vmatpush.msra.mxu0 %v240
        %342 = vmatpush.msra.mxu0 %v238
        %343 = vmatpush.msra.mxu0 %v236
        %344 = vmatpush.msra.mxu0 %v234
        %345 = vmatpush.msra.mxu0 %v232
        %346 = vmatpush.msra.mxu0 %v230
        %347 = vmatpush.msra.mxu0 %v228
        %348 = vmatpush.msra.mxu0 %v226
        %349 = vmatpush.msra.mxu0 %v224
        %350 = vmatpush.msra.mxu0 %v222
        %351 = vmatpush.msra.mxu0 %v220
        %352 = vmatpush.msra.mxu0 %v218
        %353 = vmatpush.msra.mxu0 %v216
        %354 = vmatpush.msra.mxu0 %v214
        %355 = vmatpush.msra.mxu0 %v212
        %356 = vmatpush.msra.mxu0 %v210
        %357 = vmatmul.f32.gmra.mxu0 %v144
        %v358 = vpop.f32.mrf.mxu0
        %v359 = vadd.f32 %v339, %v358
        %360 = vdwg.mxu0
        %v361 = vmul.f32 %v299, 0.05103104
        %vm362 = vcmask 523264
        %v363 = vsel %vm362, %v361, 0.0
        %365 = vrot.lane.b32.xlu0 %v299, 64
        %v366 = vpop.permute.xlu0 %365
        %v368 = vsel %vm362, %v366, 0.0
        %369 = vmatpush.xpose.msra.mxu0 0.0
        %370 = vmatpush.xpose.msra.mxu0 0.0
        %371 = vmatpush.xpose.msra.mxu0 0.0
        %372 = vmatpush.xpose.msra.mxu0 0.0
        %373 = vmatpush.xpose.msra.mxu0 0.0
        %374 = vmatpush.xpose.msra.mxu0 0.0
        %375 = vmatpush.xpose.msra.mxu0 0.0
        %376 = vmatpush.xpose.msra.mxu0 0.0
        %377 = vmatpush.xpose.msra.mxu0 0.0
        %378 = vmatpush.xpose.msra.mxu0 0.0
        %379 = vmatpush.xpose.msra.mxu0 0.0
        %380 = vmatpush.xpose.msra.mxu0 0.0
        %381 = vmatpush.xpose.msra.mxu0 0.0
        %382 = vmatpush.xpose.msra.mxu0 0.0
        %383 = vmatpush.xpose.msra.mxu0 0.0
        %384 = vmatpush.xpose.msra.mxu0 %v368
        %385 = vmatmul.f32.gmra.mxu0 %v363
        %v386 = vpop.f32.mrf.mxu0
        %v387 = vadd.f32 0.0, %v386
        %388 = vdwg.mxu0
        %v389 = vlaneseq
        %v390 = vshrl.u32 %v389, 7
        %v391 = vlaneseq
        %v392 = vand.u32 %v391, 127
        %vm393 = vcmp.ge.s32.totalorder %v390, %v392
        %v394 = vsel %vm393, %v387, -1e+30
        %vm395 = vcmask 64512
        %v396 = vsel %vm395, %v394, -inf
        %397 = vmax.xlane.f32.xlu0 %v396
        %v398 = vpop.xlane.xlu0 %397
        %v399 = vsub.f32 %v394, %v398
        %v400 = vmul.f32 %v399, 1.442695
        %v401 = vpow.pop %v400
        %v402 = vsel %vm395, %v401, 0.0
        %403 = vadd.xlane.f32.xlu0 %v402
        %v404 = vpop.xlane.xlu0 %403
        %v405 = vrcp.pop %v404
        %v406 = vmul.f32 %v404, %v405
        %v407 = vsub.f32 1.0, %v406
        %v408 = vmul.f32 %v405, %v407
        %v409 = vadd.f32 %v405, %v408
        %vm410 = vweird.f32 %v404
        %vm411 = vweird.f32 %v405
        %vm412 = vmor %vm410, %vm411
        %v413 = vsel %vm412, %v405, %v409
        %v414 = vand.u32 2147483647, %v404
        %vm415 = vcmp.eq.f32.partialorder %v414, 8.507059e+37
        %v416 = vand.u32 %v404, 2147483648
        %v417 = vor.u32 1.1754944e-38, %v416
        %v418 = vsel %vm415, %v417, %v413
        %v419 = vmul.f32 %v401, %v418
        %v421 = vsel %vm395, %v419, 0
        %423 = vmatpush.msra.mxu0 0.0
        %424 = vmatpush.msra.mxu0 0.0
        %425 = vmatpush.msra.mxu0 0.0
        %426 = vmatpush.msra.mxu0 0.0
        %427 = vmatpush.msra.mxu0 0.0
        %428 = vmatpush.msra.mxu0 0.0
        %429 = vmatpush.msra.mxu0 0.0
        %430 = vmatpush.msra.mxu0 0.0
        %431 = vmatpush.msra.mxu0 0.0
        %432 = vmatpush.msra.mxu0 0.0
        %433 = vmatpush.msra.mxu0 0.0
        %434 = vmatpush.msra.mxu0 0.0
        %435 = vmatpush.msra.mxu0 0.0
        %436 = vmatpush.msra.mxu0 0.0
        %437 = vmatpush.msra.mxu0 0.0
        %438 = vmatpush.msra.mxu0 %v359
        %439 = vmatmul.f32.gmra.mxu0 %v421
        %v440 = vpop.f32.mrf.mxu0
        %v441 = vadd.f32 0.0, %v440
        %442 = vdwg.mxu0
        %443 = vst.msk [vmem:[%s136] sm:$0xff] %vm362, %v441
        %s444 = sand.u32 %s71, 1
        %s445 = scalar_lea.sflag [#allocation3], %s444
        %s446 = sand.u32 %s71, 1
        %s447 = smul.addr %s446, 8
        %s448 = scalar_lea.vmem [#allocation2], %s447
        // Predicated region
        $region29: #{tpu_custom_call.1} parent=27 // pred_check
          %p449 = pneg %p81
        $region30: #{tpu_custom_call.1} parent=27 // pred_check_branch
          %451 = sbr.rel (%p449) target = $region32
        $region31: #{tpu_custom_call.1} parent=27 // pred_region
          %453 = vsyncadd %s445, 0
          %s454 = smul.addr %s16, 8
          %s455 = scalar_lea.hbm %s2, %s454
          %s457 = sshll.u32 %s448, 4
          %s458 = int_to_ptr.vmem [resolvable:$true] %s457
          %s459 = sshll.u32 %s455, 4
          %s460 = int_to_ptr.hbm [resolvable:$true] %s459
          %462 = dma.vmem_to_hbm [thread:$0]  %s458, 128, %s460, %s445
        $region32: #{tpu_custom_call.1} parent=27 // pred_fallthru
          _
      $region28: #{tpu_custom_call.1} parent=5 // pred_fallthru
        _
      %p463 = scmp.le.s32.totalorder 2, %s11
      // Predicated region
      $region33: #{tpu_custom_call.1} parent=5 // pred_check
        %p464 = pneg %p463
      $region34: #{tpu_custom_call.1} parent=5 // pred_check_branch
        %466 = sbr.rel (%p464) target = $region36
      $region35: #{tpu_custom_call.1} parent=5 // pred_region
        %s467 = ssub.s32 %s11, 2
        // Predicated region
        $region37: #{tpu_custom_call.1} parent=35 // pred_check
          %p468 = pneg %p87
        $region38: #{tpu_custom_call.1} parent=35 // pred_check_branch
          %470 = sbr.rel (%p468) target = $region40
        $region39: #{tpu_custom_call.1} parent=35 // pred_region
          %s471 = sand.u32 %s72, 1
          %s472 = scalar_lea.sflag [#allocation3], %s471
          %s473 = sand.u32 %s72, 1
          %s474 = smul.addr %s473, 8
          %s475 = scalar_lea.vmem [#allocation2], %s474
          %477 = dma.done %s472, 128
        $region40: #{tpu_custom_call.1} parent=35 // pred_fallthru
          _
      $region36: #{tpu_custom_call.1} parent=5 // pred_fallthru
        _
    $region6: #{tpu_custom_call.1} parent=1 // loop_footer
      %s15 = sadd.s32 1, %s11
    $region7: #{tpu_custom_call.1} parent=1 // loop_footer_branch
      %10 = sbr.rel target = $region3
    $region8: #{tpu_custom_call.1} parent=1 // loop_exit
      _
    %478 = vsyncpa [#allocation3], 1
    %s479 = scalar_lea.sflag [#allocation3], 1
    %480 = vsyncpa %s479, 1

</llo_original>
